<compile_context>
chip_gen: v6e
topology: v6e:2x2x1
jax: 0.10.0
libtpu: 0.0.40
codegen_flags: <defaults>
</compile_context>

<pallas_src>
import math

import jax
import jax.numpy as jnp
from jax import lax
from jax.experimental import pallas as pl
from jax.experimental.pallas import tpu as pltpu


def _round_up(x: int, m: int) -> int:
    return (x + m - 1) // m * m


# ----------------------------------------------------------------------------
# Pallas kernel: fused patch-projection matmul + bias add
# ----------------------------------------------------------------------------
def _patch_proj_kernel(p_ref, w_ref, b_ref, o_ref):
    # p_ref: (tile_m, K)  bf16 patch tile (streamed, double-buffered)
    # w_ref: (K, Ep)      bf16 projection weight (VMEM-resident across grid)
    # b_ref: (1, Ep)      f32 bias               (VMEM-resident across grid)
    # o_ref: (tile_m, Ep) output tile
    acc = jnp.dot(p_ref[...], w_ref[...], preferred_element_type=jnp.float32)
    o_ref[...] = (acc + b_ref[...]).astype(o_ref.dtype)


def patch_proj_pallas(patches: jax.Array, w_flat: jax.Array, bias: jax.Array,
                      *, out_dtype=jnp.bfloat16, tile_m: int = 512) -> jax.Array:
    """patches: (M, K), w_flat: (K, E), bias: (E,) -> (M, E) in out_dtype."""
    M, K = patches.shape
    E = w_flat.shape[1]
    in_isz = jnp.dtype(patches.dtype).itemsize
    out_isz = jnp.dtype(out_dtype).itemsize

    # --- lane-dense output: pad E (tiny weight/bias only) to a multiple of 128.
    #     No-op for real dust3r configs (E = 768 / 1024).
    Ep = _round_up(E, 128)
    if Ep != E:
        w_flat = jnp.pad(w_flat, ((0, 0), (0, Ep - E)))
        bias = jnp.pad(bias, (0, Ep - E))
    bias2d = bias.reshape(1, Ep).astype(jnp.float32)

    # --- tile_m selection: multiple of 16 (bf16 sublane packing); no M padding --
    #     the partial last block is handled by Pallas with masked writes.
    if M < 16:
        tile_m = M                                   # full-dim block (always legal)
    else:
        tile_m = min(tile_m, _round_up(M, 16))
        # guarantee >= 2 grid steps so the "parallel" axis feeds both v7x TensorCores
        tile_m = min(tile_m, max(16, _round_up(pl.cdiv(M, 2), 16)))
    n_tiles = pl.cdiv(M, tile_m)

    cost = pl.CostEstimate(
        flops=2 * M * K * Ep,
        transcendentals=0,
        bytes_accessed=(M * K * in_isz + K * Ep * in_isz + Ep * 4 + M * Ep * out_isz),
    )

    # --- VMEM budget: 2x streamed patch tile + 2x out tile + resident weight/bias,
    #     plus headroom; capped well below v7x's 64 MiB per-core VMEM.
    vmem_bytes = (2 * tile_m * K * in_isz + 2 * tile_m * Ep * out_isz
                  + 2 * K * Ep * in_isz + 2 * 8 * Ep * 4)
    vmem_limit = min(max(int(vmem_bytes * 1.5) + (2 << 20), 8 << 20), 32 << 20)

    out = pl.pallas_call(
        _patch_proj_kernel,
        out_shape=jax.ShapeDtypeStruct((M, Ep), out_dtype),
        grid=(n_tiles,),
        in_specs=[
            pl.BlockSpec((tile_m, K), lambda i: (i, 0)),   # streamed patches (full-K block)
            pl.BlockSpec((K, Ep), lambda i: (0, 0)),       # weight: resident
            pl.BlockSpec((1, Ep), lambda i: (0, 0)),       # bias:   resident
        ],
        out_specs=pl.BlockSpec((tile_m, Ep), lambda i: (i, 0)),
        compiler_params=pltpu.CompilerParams(
            dimension_semantics=("parallel",),             # megacore shard on v7x
            vmem_limit_bytes=vmem_limit,
        ),
        cost_estimate=cost,
    )(patches, w_flat, bias2d)

    return out[:, :E] if Ep != E else out


# ----------------------------------------------------------------------------
# PatchEmbed forward
# ----------------------------------------------------------------------------
def patch_embed_forward(x, w, b, patch_size, *, compute_dtype=jnp.bfloat16,
                        out_dtype=jnp.bfloat16):
    """x: (B, C, H, W) NCHW; w: (E, C, ph, pw) conv weight; b: (E,) bias.

    Returns (B, num_patches, E), matching proj(x).flatten(2).transpose(1, 2)
    (norm = Identity).  Output dtype is bf16 by default (f32 accumulation inside
    the kernel); pass out_dtype=jnp.float32 if the consumer needs f32.
    """
    B, C, H, W = x.shape
    E = w.shape[0]
    ph, pw = patch_size
    Hp, Wp = H // ph, W // pw

    # --- patch extraction + cast: one fused HBM pass under jit (reshapes are
    #     metadata-only; transpose + convert fuse into a single copy fusion).
    # TODO(synk): move this NCHW->im2col relayout into the Pallas kernel (read x
    # directly via a (1, C, R*ph, W) block and rearrange in VMEM) to drop this pass.
    xp = x.reshape(B, C, Hp, ph, Wp, pw)
    xp = jnp.transpose(xp, (0, 2, 4, 1, 3, 5)).astype(compute_dtype)
    patches = xp.reshape(B * Hp * Wp, C * ph * pw)

    # conv weight (E, C, ph, pw) -> (C*ph*pw, E); tiny, cast to bf16 for the MXU.
    w_flat = w.reshape(E, C * ph * pw).T.astype(compute_dtype)

    # --- hot path in Pallas ---
    out = patch_proj_pallas(patches, w_flat, b, out_dtype=out_dtype)

    # (B*Hp*Wp, E) -> (B, Hp*Wp, E)  == flatten(2).transpose(1, 2)
    return out.reshape(B, Hp * Wp, E)


# ----------------------------------------------------------------------------
# Deterministic parameter init (matches module shapes; xavier_uniform on the
# flattened conv weight as in _init_weights)
# ----------------------------------------------------------------------------
def init_params(key, in_chans, embed_dim, patch_size):
    ph, pw = patch_size
    k_w, k_b = jax.random.split(key)
    fan_in = in_chans * ph * pw
    fan_out = embed_dim
    bound_w = math.sqrt(6.0 / (fan_in + fan_out))  # xavier_uniform on (E, K) view
    w = jax.random.uniform(
        k_w, (embed_dim, in_chans, ph, pw), jnp.float32, -bound_w, bound_w
    )
    bound_b = 1.0 / math.sqrt(fan_in)  # PyTorch Conv2d default bias init
    b = jax.random.uniform(k_b, (embed_dim,), jnp.float32, -bound_b, bound_b)
    return w, b


if __name__ == "__main__":
    # Small shapes consistent with the module: img 32x32, patch 8x8, in_chans=4,
    # embed_dim=32  ->  (B=2, N=16 patches, E=32); exercises a 2-step parallel grid.
    B, C, H, W = 2, 4, 32, 32
    patch_size = (8, 8)
    embed_dim = 32

    key = jax.random.PRNGKey(0)
    k_x, k_p = jax.random.split(key)
    x = jax.random.normal(k_x, (B, C, H, W), jnp.float32)
    w, b = init_params(k_p, C, embed_dim, patch_size)

    fwd = jax.jit(lambda x_, w_, b_: patch_embed_forward(x_, w_, b_, patch_size))
    out = fwd(x, w, b)
    out = jax.block_until_ready(out)

    # Reference: XLA strided conv (same semantics as nn.Conv2d) with the same
    # bf16-rounded operands the kernel consumes (f32 accumulation in both).
    x_q = x.astype(jnp.bfloat16).astype(jnp.float32)
    w_q = w.astype(jnp.bfloat16).astype(jnp.float32)
    ref = lax.conv_general_dilated(
        x_q, w_q, window_strides=patch_size, padding="VALID",
        dimension_numbers=("NCHW", "OIHW", "NCHW"),
    ) + b.reshape(1, embed_dim, 1, 1)
    ref = ref.reshape(B, embed_dim, -1).transpose(0, 2, 1)  # flatten(2).transpose(1,2)

    n_patches = (H // patch_size[0]) * (W // patch_size[1])
    assert out.shape == (B, n_patches, embed_dim)
    # Tolerance accounts for the bf16 output rounding (accumulation is f32 in both).
    assert jnp.allclose(out.astype(jnp.float32), ref, atol=2e-2, rtol=2e-2)

    print("KERNEL_OK")
</pallas_src>

<mosaic_0001>
module attributes {stable_mosaic.version = 11 : i64} {
  func.func @_patch_proj_kernel(%arg0: i32, %arg1: memref<16x256xbf16, #tpu.memory_space<vmem>>, %arg2: memref<256x128xbf16, #tpu.memory_space<vmem>>, %arg3: memref<1x128xf32, #tpu.memory_space<vmem>>, %arg4: memref<16x128xbf16, #tpu.memory_space<vmem>>) attributes {dimension_semantics = [#tpu.dimension_semantics<parallel>], iteration_bounds = array<i64: 2>, scalar_prefetch = 0 : i64, scratch_operands = 0 : i64, tpu.core_type = #tpu.core_type<tc>, window_params = [{transform_indices = @transform_0, window_bounds = array<i64: 16, 256>}, {pipeline_mode = #tpu.pipeline_mode<synchronous>, transform_indices = @transform_1, window_bounds = array<i64: 256, 128>}, {pipeline_mode = #tpu.pipeline_mode<synchronous>, transform_indices = @transform_2, window_bounds = array<i64: 1, 128>}, {transform_indices = @transform_3, window_bounds = array<i64: 16, 128>}]} {
    %c0 = arith.constant 0 : index
    %c0_0 = arith.constant 0 : index
    %0 = vector.load %arg1[%c0, %c0_0] : memref<16x256xbf16, #tpu.memory_space<vmem>>, vector<16x256xbf16>
    %c0_1 = arith.constant 0 : index
    %c0_2 = arith.constant 0 : index
    %1 = vector.load %arg2[%c0_1, %c0_2] : memref<256x128xbf16, #tpu.memory_space<vmem>>, vector<256x128xbf16>
    %cst = arith.constant dense<0.000000e+00> : vector<16x128xf32>
    %2 = tpu.matmul %0, %1, %cst {dimension_numbers = #tpu.dot_dimension_numbers<[1], [0], [0], [1], [0, 0, 1, 1], [], []>} : vector<16x256xbf16>, vector<256x128xbf16>, vector<16x128xf32> -> vector<16x128xf32>
    %c0_3 = arith.constant 0 : index
    %c0_4 = arith.constant 0 : index
    %3 = vector.load %arg3[%c0_3, %c0_4] : memref<1x128xf32, #tpu.memory_space<vmem>>, vector<1x128xf32>
    %4 = vector.broadcast %3 : vector<1x128xf32> to vector<16x128xf32>
    %5 = arith.addf %2, %4 : vector<16x128xf32>
    %6 = arith.truncf %5 : vector<16x128xf32> to vector<16x128xbf16>
    %c0_5 = arith.constant 0 : index
    %c0_6 = arith.constant 0 : index
    %7 = vector.load %arg4[%c0_5, %c0_6] : memref<16x128xbf16, #tpu.memory_space<vmem>>, vector<16x128xbf16>
    tpu.vector_store %arg4[%c0_5, %c0_6], %6 {strides = array<i32>} : memref<16x128xbf16, #tpu.memory_space<vmem>>, vector<16x128xbf16>,
    return
  }
  func.func @transform_0(%arg0: i32) -> (i32, i32) {
    %c0_i32 = arith.constant 0 : i32
    %c0_i32_0 = arith.constant 0 : i32
    return %arg0, %c0_i32 : i32, i32
  }
  func.func @transform_1(%arg0: i32) -> (i32, i32) {
    %c0_i32 = arith.constant 0 : i32
    %c0_i32_0 = arith.constant 0 : i32
    %c0_i32_1 = arith.constant 0 : i32
    return %c0_i32, %c0_i32_0 : i32, i32
  }
  func.func @transform_2(%arg0: i32) -> (i32, i32) {
    %c0_i32 = arith.constant 0 : i32
    %c0_i32_0 = arith.constant 0 : i32
    %c0_i32_1 = arith.constant 0 : i32
    return %c0_i32, %c0_i32_0 : i32, i32
  }
  func.func @transform_3(%arg0: i32) -> (i32, i32) {
    %c0_i32 = arith.constant 0 : i32
    %c0_i32_0 = arith.constant 0 : i32
    return %arg0, %c0_i32 : i32, i32
  }
}

</mosaic_0001>

<llo_original>
// kernel: _lambda_.1
$region0: #{_lambda_.1}
  #allocation0 [shape = 'u32[]', space=smem, size = 0x4, offset = 0x4, fixed_abs, tag = 'smem constant byte address 0x4 - core index']
  #allocation1 [shape = 'u32[144,128]{1,0:T(1,128)}', space=vmem, size = 0x12000, scoped, tag = 'internal scratch']
  %s0 = inlined_call_operand.vmem [shape: bf16[32,256], index: 0, kind: input, shape index: {}]
  %s1 = inlined_call_operand.vmem [shape: bf16[256,128], index: 1, kind: input, shape index: {}]
  %s2 = inlined_call_operand.vmem [shape: f32[1,128], index: 2, kind: input, shape index: {}]
  %s3 = inlined_call_operand.hbm [shape: bf16[32,128], index: 3, kind: output, shape index: {}]
  %s4 = sld [smem:[#allocation0]]
  $region45: #{_lambda_.1} parent=0
    _
  %s6 = ssub.s32 1, %s4
  %s7 = scalar_select 0, %s6, %s4
  $region1: #{_lambda_.1} parent=0
    #allocation2 [shape = 'u8[8192]{0}', space=vmem, size = 0x2000, scoped, tag = 'output window, operand 0']
    #allocation3 [shape = 's32[2]{0}', space=sflag, size = 0x8, scoped, tag = 'scoped memory for _lambda_.1']
    %8 = vsyncpa [#allocation3], 0
    %s9 = scalar_lea.sflag [#allocation3], 1
    %10 = vsyncpa %s9, 0
    loop: start=0, step=1, limit=4
    $region2: #{_lambda_.1} parent=1 // loop_pre_header
      _
    $region3: #{_lambda_.1} parent=1 // loop_header
      %s12 = sphi 0, %s16
      %p13 = scmp.ge.s32.totalorder %s12, 4
      %s22 = sphi 0, %s24
      %s25 = sphi 0, %s22
      %s26 = sphi 0, %s25
      %s42 = sphi 0, %s26
      %s46 = sphi 0, %s46
      %s48 = sphi 0, %s46
      %s49 = sphi 0, %s48
      %s63 = sphi 0, %s49
      %s67 = sphi 0, %s67
      %s69 = sphi 0, %s67
      %s70 = sphi 0, %s69
      %s84 = sphi 0, %s70
      %s90 = sphi 0, %s92
      %s93 = sphi 0, %s90
      %s94 = sphi 0, %s93
      %s110 = sphi 0, %s94
    $region4: #{_lambda_.1} parent=1 // loop_header_branch
      %15 = sbr.rel (%p13) target = $region8
    $region5: #{_lambda_.1} parent=1 // loop_body
      %s17 = ssub.s32 %s12, 1
      %s18 = ssub.s32 %s12, 2
      %s19 = sadd.s32 %s12, 1
      %s20 = ssub.s32 %s12, %s19
      %p21 = scmp.eq.s32.totalorder %s20, 0
      %s23 = sadd.s32 %s22, 1
      %s24 = scalar_select %p21, %s22, %s23
      %p27 = pneg %p21
      %p28 = scmp.eq.s32.totalorder %s12, 1
      %p29 = por %p27, %p28
      %p30 = scmp.ne.s32.totalorder %s22, %s25
      %p31 = scmp.eq.s32.totalorder %s12, 0
      %p32 = por %p30, %p31
      %p33 = scmp.ne.s32.totalorder %s22, %s25
      %p34 = scmp.eq.s32.totalorder %s17, 1
      %p35 = por %p33, %p34
      %p36 = scmp.ne.s32.totalorder %s25, %s26
      %p37 = scmp.eq.s32.totalorder %s17, 0
      %p38 = por %p36, %p37
      %p39 = scmp.ne.s32.totalorder %s25, %s26
      %p40 = scmp.eq.s32.totalorder %s18, 1
      %p41 = por %p39, %p40
      %p43 = scmp.ne.s32.totalorder %s26, %s42
      %p44 = scmp.eq.s32.totalorder %s18, 0
      %p45 = por %p43, %p44
      %s47 = sadd.s32 %s46, 1
      %p50 = scmp.eq.s32.totalorder %s12, 1
      %p51 = scmp.ne.s32.totalorder %s46, %s48
      %p52 = scmp.eq.s32.totalorder %s12, 0
      %p53 = por %p51, %p52
      %p54 = scmp.ne.s32.totalorder %s46, %s48
      %p55 = scmp.eq.s32.totalorder %s17, 1
      %p56 = por %p54, %p55
      %p57 = scmp.ne.s32.totalorder %s48, %s49
      %p58 = scmp.eq.s32.totalorder %s17, 0
      %p59 = por %p57, %p58
      %p60 = scmp.ne.s32.totalorder %s48, %s49
      %p61 = scmp.eq.s32.totalorder %s18, 1
      %p62 = por %p60, %p61
      %p64 = scmp.ne.s32.totalorder %s49, %s63
      %p65 = scmp.eq.s32.totalorder %s18, 0
      %p66 = por %p64, %p65
      %s68 = sadd.s32 %s67, 1
      %p71 = scmp.eq.s32.totalorder %s12, 1
      %p72 = scmp.ne.s32.totalorder %s67, %s69
      %p73 = scmp.eq.s32.totalorder %s12, 0
      %p74 = por %p72, %p73
      %p75 = scmp.ne.s32.totalorder %s67, %s69
      %p76 = scmp.eq.s32.totalorder %s17, 1
      %p77 = por %p75, %p76
      %p78 = scmp.ne.s32.totalorder %s69, %s70
      %p79 = scmp.eq.s32.totalorder %s17, 0
      %p80 = por %p78, %p79
      %p81 = scmp.ne.s32.totalorder %s69, %s70
      %p82 = scmp.eq.s32.totalorder %s18, 1
      %p83 = por %p81, %p82
      %p85 = scmp.ne.s32.totalorder %s70, %s84
      %p86 = scmp.eq.s32.totalorder %s18, 0
      %p87 = por %p85, %p86
      %s88 = ssub.s32 %s12, %s19
      %p89 = scmp.eq.s32.totalorder %s88, 0
      %s91 = sadd.s32 %s90, 1
      %s92 = scalar_select %p89, %s90, %s91
      %p95 = pneg %p89
      %p96 = scmp.eq.s32.totalorder %s12, 1
      %p97 = por %p95, %p96
      %p98 = scmp.ne.s32.totalorder %s90, %s93
      %p99 = scmp.eq.s32.totalorder %s12, 0
      %p100 = por %p98, %p99
      %p101 = scmp.ne.s32.totalorder %s90, %s93
      %p102 = scmp.eq.s32.totalorder %s17, 1
      %p103 = por %p101, %p102
      %p104 = scmp.ne.s32.totalorder %s93, %s94
      %p105 = scmp.eq.s32.totalorder %s17, 0
      %p106 = por %p104, %p105
      %p107 = scmp.ne.s32.totalorder %s93, %s94
      %p108 = scmp.eq.s32.totalorder %s18, 1
      %p109 = por %p107, %p108
      %p111 = scmp.ne.s32.totalorder %s94, %s110
      %p112 = scmp.eq.s32.totalorder %s18, 0
      %p113 = por %p111, %p112
      %p114 = scmp.le.s32.totalorder 1, %s12
      %p115 = scmp.lt.s32.totalorder %s12, 3
      %p116 = pnand %p114, %p115
      %p117 = pneg %p116
      // Predicated region
      $region9: #{_lambda_.1} parent=5 // pred_check
        _
      $region10: #{_lambda_.1} parent=5 // pred_check_branch
        %119 = sbr.rel (%p116) target = $region12
      $region11: #{_lambda_.1} parent=5 // pred_region
        %s120 = ssub.s32 %s12, 1
        // Predicated region
        $region13: #{_lambda_.1} parent=11 // pred_check
          %p121 = pneg %p59
        $region14: #{_lambda_.1} parent=11 // pred_check_branch
          %123 = sbr.rel (%p121) target = $region16
        $region15: #{_lambda_.1} parent=11 // pred_region
          _
        $region16: #{_lambda_.1} parent=11 // pred_fallthru
          _
        // Predicated region
        $region17: #{_lambda_.1} parent=11 // pred_check
          %p124 = pneg %p80
        $region18: #{_lambda_.1} parent=11 // pred_check_branch
          %126 = sbr.rel (%p124) target = $region20
        $region19: #{_lambda_.1} parent=11 // pred_region
          _
        $region20: #{_lambda_.1} parent=11 // pred_fallthru
          _
      $region12: #{_lambda_.1} parent=5 // pred_fallthru
        _
      %p127 = scmp.lt.s32.totalorder %s12, 2
      // Predicated region
      $region21: #{_lambda_.1} parent=5 // pred_check
        %p128 = pneg %p127
      $region22: #{_lambda_.1} parent=5 // pred_check_branch
        %130 = sbr.rel (%p128) target = $region24
      $region23: #{_lambda_.1} parent=5 // pred_region
        // Predicated region
        $region25: #{_lambda_.1} parent=23 // pred_check
          %p131 = pneg %p32
        $region26: #{_lambda_.1} parent=23 // pred_check_branch
          %133 = sbr.rel (%p131) target = $region28
        $region27: #{_lambda_.1} parent=23 // pred_region
          %s134 = smul.u32 2, %s12
          %p135 = scmp.lt.s32.totalorder %s134, 3
          %s136 = scalar_select %p135, %s134, 3
          %s137 = smul.addr %s136, 2
          %s138 = smul.addr %s137, 4
          %s139 = scalar_lea.vmem %s0, %s138
          %s140 = smul.u32 2, %s12
        $region28: #{_lambda_.1} parent=23 // pred_fallthru
          _
      $region24: #{_lambda_.1} parent=5 // pred_fallthru
        _
      %p141 = scmp.le.s32.totalorder 1, %s12
      %p142 = scmp.lt.s32.totalorder %s12, 3
      %p143 = pnand %p141, %p142
      %p144 = pneg %p143
      // Predicated region
      $region29: #{_lambda_.1} parent=5 // pred_check
        _
      $region30: #{_lambda_.1} parent=5 // pred_check_branch
        %146 = sbr.rel (%p143) target = $region32
      $region31: #{_lambda_.1} parent=5 // pred_region
        %s147 = ssub.s32 %s12, 1
        %s148 = smul.u32 2, %s17
        %p149 = scmp.lt.s32.totalorder %s148, 3
        %s150 = scalar_select %p149, %s148, 3
        %s151 = smul.addr %s150, 2
        %s152 = smul.addr %s151, 4
        %s153 = scalar_lea.vmem %s0, %s152
        %p154 = pneg %p38
        %p155 = pneg %p35
        %p156 = pneg %p59
        %p157 = pneg %p56
        %p158 = pneg %p80
        %p159 = pneg %p77
        %p160 = pneg %p106
        %p161 = pneg %p103
        %s162 = sand.u32 %s93, 1
        %s163 = scalar_lea.sflag [#allocation3], %s162
        %s164 = sand.u32 %s93, 1
        %s165 = smul.addr %s164, 8
        %s166 = scalar_lea.vmem [#allocation2], %s165
        %s167 = smul.u32 2, %s17
        %p168 = scmp.lt.s32.totalorder %s167, 3
        %s169 = scalar_select %p168, %s167, 3
        %s170 = smul.addr %s169, 2
        %s171 = smul.addr %s170, 4
        %s172 = scalar_lea.vmem %s0, %s171
        %s173 = smul.u32 2, %s17
        %s174 = smul.u32 2, %s17
        %v176 = vld [vmem:[%s172] sm:$0xff]
        %v177 = vld [vmem:[%s172 + $0x8] sm:$0xff]
        %v178 = vld [vmem:[%s1] sm:$0xf]
        %v179 = vld [vmem:[%s1 + $0x4] sm:$0xf]
        %v180 = vld [vmem:[%s1 + $0x8] sm:$0xf]
        %v181 = vld [vmem:[%s1 + $0xc] sm:$0xf]
        %v182 = vld [vmem:[%s1 + $0x10] sm:$0xf]
        %v183 = vld [vmem:[%s1 + $0x14] sm:$0xf]
        %v184 = vld [vmem:[%s1 + $0x18] sm:$0xf]
        %v185 = vld [vmem:[%s1 + $0x1c] sm:$0xf]
        %v186 = vld [vmem:[%s1 + $0x20] sm:$0xf]
        %v187 = vld [vmem:[%s1 + $0x24] sm:$0xf]
        %v188 = vld [vmem:[%s1 + $0x28] sm:$0xf]
        %v189 = vld [vmem:[%s1 + $0x2c] sm:$0xf]
        %v190 = vld [vmem:[%s1 + $0x30] sm:$0xf]
        %v191 = vld [vmem:[%s1 + $0x34] sm:$0xf]
        %v192 = vld [vmem:[%s1 + $0x38] sm:$0xf]
        %v193 = vld [vmem:[%s1 + $0x3c] sm:$0xf]
        %v194 = vld [vmem:[%s1 + $0x40] sm:$0xf]
        %v195 = vld [vmem:[%s1 + $0x44] sm:$0xf]
        %v196 = vld [vmem:[%s1 + $0x48] sm:$0xf]
        %v197 = vld [vmem:[%s1 + $0x4c] sm:$0xf]
        %v198 = vld [vmem:[%s1 + $0x50] sm:$0xf]
        %v199 = vld [vmem:[%s1 + $0x54] sm:$0xf]
        %v200 = vld [vmem:[%s1 + $0x58] sm:$0xf]
        %v201 = vld [vmem:[%s1 + $0x5c] sm:$0xf]
        %v202 = vld [vmem:[%s1 + $0x60] sm:$0xf]
        %v203 = vld [vmem:[%s1 + $0x64] sm:$0xf]
        %v204 = vld [vmem:[%s1 + $0x68] sm:$0xf]
        %v205 = vld [vmem:[%s1 + $0x6c] sm:$0xf]
        %v206 = vld [vmem:[%s1 + $0x70] sm:$0xf]
        %v207 = vld [vmem:[%s1 + $0x74] sm:$0xf]
        %v208 = vld [vmem:[%s1 + $0x78] sm:$0xf]
        %v209 = vld [vmem:[%s1 + $0x7c] sm:$0xf]
        %v210 = vld [vmem:[%s2] sm:$0x1]
        %v212 = vlaneseq
        %v213 = vshrl.u32 %v212, 7
        %v214 = vsub.s32 0, %v213
        %v215 = vrot.slane %v210, %v214
        %v219 = vunpack.c.l.b16 %v176
        %v220 = vunpack.c.h.b16 %v176
        %v221 = vunpack.c.l.b16 %v177
        %v222 = vunpack.c.h.b16 %v177
        %v223 = vpack.c.b16 %v221, %v219
        %v224 = vpack.c.b16 %v222, %v220
        %v259 = vunpack.c.l.b16 %v178
        %v260 = vunpack.c.l.b16 %v179
        %v261 = vunpack.c.l.b16 %v180
        %v262 = vunpack.c.l.b16 %v181
        %v263 = vunpack.c.l.b16 %v182
        %v264 = vunpack.c.l.b16 %v183
        %v265 = vunpack.c.l.b16 %v184
        %v266 = vunpack.c.l.b16 %v185
        %v267 = vunpack.c.l.b16 %v186
        %v268 = vunpack.c.l.b16 %v187
        %v269 = vunpack.c.l.b16 %v188
        %v270 = vunpack.c.l.b16 %v189
        %v271 = vunpack.c.l.b16 %v190
        %v272 = vunpack.c.l.b16 %v191
        %v273 = vunpack.c.l.b16 %v192
        %v274 = vunpack.c.l.b16 %v193
        %v275 = vunpack.c.l.b16 %v194
        %v276 = vunpack.c.l.b16 %v195
        %v277 = vunpack.c.l.b16 %v196
        %v278 = vunpack.c.l.b16 %v197
        %v279 = vunpack.c.l.b16 %v198
        %v280 = vunpack.c.l.b16 %v199
        %v281 = vunpack.c.l.b16 %v200
        %v282 = vunpack.c.l.b16 %v201
        %v283 = vunpack.c.l.b16 %v202
        %v284 = vunpack.c.l.b16 %v203
        %v285 = vunpack.c.l.b16 %v204
        %v286 = vunpack.c.l.b16 %v205
        %v287 = vunpack.c.l.b16 %v206
        %v288 = vunpack.c.l.b16 %v207
        %v289 = vunpack.c.l.b16 %v208
        %v290 = vunpack.c.l.b16 %v209
        %v291 = vpack.c.b16 %v260, %v259
        %v292 = vpack.c.b16 %v262, %v261
        %v293 = vpack.c.b16 %v264, %v263
        %v294 = vpack.c.b16 %v266, %v265
        %v295 = vpack.c.b16 %v268, %v267
        %v296 = vpack.c.b16 %v270, %v269
        %v297 = vpack.c.b16 %v272, %v271
        %v298 = vpack.c.b16 %v274, %v273
        %v299 = vpack.c.b16 %v276, %v275
        %v300 = vpack.c.b16 %v278, %v277
        %v301 = vpack.c.b16 %v280, %v279
        %v302 = vpack.c.b16 %v282, %v281
        %v303 = vpack.c.b16 %v284, %v283
        %v304 = vpack.c.b16 %v286, %v285
        %v305 = vpack.c.b16 %v288, %v287
        %v306 = vpack.c.b16 %v290, %v289
        %323 = vmatprep.subr.bf16.mxu0 0
        %324 = vmatpush1.bf16.msra.mxu0 %v298
        %325 = vmatprep.subr.bf16.mxu0 0
        %326 = vmatpush1.bf16.msra.mxu0 %v297
        %327 = vmatprep.subr.bf16.mxu0 0
        %328 = vmatpush1.bf16.msra.mxu0 %v296
        %329 = vmatprep.subr.bf16.mxu0 0
        %330 = vmatpush1.bf16.msra.mxu0 %v295
        %331 = vmatprep.subr.bf16.mxu0 0
        %332 = vmatpush1.bf16.msra.mxu0 %v294
        %333 = vmatprep.subr.bf16.mxu0 0
        %334 = vmatpush1.bf16.msra.mxu0 %v293
        %335 = vmatprep.subr.bf16.mxu0 0
        %336 = vmatpush1.bf16.msra.mxu0 %v292
        %337 = vmatprep.subr.bf16.mxu0 0
        %338 = vmatpush1.bf16.msra.mxu0 %v291
        %339 = vmatprep.subr.bf16.mxu0 0
        %340 = vmatpush2.bf16.msra.mxu0 %v306
        %341 = vmatprep.subr.bf16.mxu0 0
        %342 = vmatpush2.bf16.msra.mxu0 %v305
        %343 = vmatprep.subr.bf16.mxu0 0
        %344 = vmatpush2.bf16.msra.mxu0 %v304
        %345 = vmatprep.subr.bf16.mxu0 0
        %346 = vmatpush2.bf16.msra.mxu0 %v303
        %347 = vmatprep.subr.bf16.mxu0 0
        %348 = vmatpush2.bf16.msra.mxu0 %v302
        %349 = vmatprep.subr.bf16.mxu0 0
        %350 = vmatpush2.bf16.msra.mxu0 %v301
        %351 = vmatprep.subr.bf16.mxu0 0
        %352 = vmatpush2.bf16.msra.mxu0 %v300
        %353 = vmatprep.subr.bf16.mxu0 0
        %354 = vmatpush2.bf16.msra.mxu0 %v299
        %355 = vmatprep.mubr.bf16.mxu0 %v224
        %356 = vmatmul.mubr.bf16.gmra.mxu0 %v223
        %v357 = vpop.f32.mrf.mxu0
        %v358 = vadd.f32 %v215, %v357
        %v359 = vpop.f32.mrf.mxu0
        %v360 = vpop.f32.mrf.mxu0
        %v361 = vadd.f32 %v215, %v360
        %v362 = vpop.f32.mrf.mxu0
        %363 = vdwg.mxu0
        %v364 = vpack.c.bf16 %v361, %v358
        %v366 = vunpack.c.l.b16 %v364
        %v367 = vunpack.c.h.b16 %v364
        %v368 = vpack.c.b16 %v366, %v366
        %v369 = vpack.c.b16 %v367, %v367
        %372 = vst [vmem:[%s166] sm:$0xf] %v368
        %373 = vst [vmem:[%s166 + $0x4] sm:$0xf] %v369
        %s374 = sand.u32 %s93, 1
        %s375 = scalar_lea.sflag [#allocation3], %s374
        %s376 = sand.u32 %s93, 1
        %s377 = smul.addr %s376, 8
        %s378 = scalar_lea.vmem [#allocation2], %s377
        // Predicated region
        $region33: #{_lambda_.1} parent=31 // pred_check
          %p379 = pneg %p103
        $region34: #{_lambda_.1} parent=31 // pred_check_branch
          %381 = sbr.rel (%p379) target = $region36
        $region35: #{_lambda_.1} parent=31 // pred_region
          %s382 = smul.u32 2, %s17
          %s384 = ssub.s32 128, 128
          %385 = vsyncadd %s375, %s384
          %s386 = smul.addr %s382, 64
          %s387 = scalar_lea.hbm %s3, %s386
          %s388 = sshll.u32 %s378, 4
          %s389 = int_to_ptr.vmem [resolvable:$true] %s388
          %394 = dma.vmem_to_hbm [thread:$0]  %s389, 128, %s387, %s375, 64, 64, 4
        $region36: #{_lambda_.1} parent=31 // pred_fallthru
          _
      $region32: #{_lambda_.1} parent=5 // pred_fallthru
        _
      %p395 = scmp.le.s32.totalorder 2, %s12
      // Predicated region
      $region37: #{_lambda_.1} parent=5 // pred_check
        %p396 = pneg %p395
      $region38: #{_lambda_.1} parent=5 // pred_check_branch
        %398 = sbr.rel (%p396) target = $region40
      $region39: #{_lambda_.1} parent=5 // pred_region
        %s399 = ssub.s32 %s12, 2
        // Predicated region
        $region41: #{_lambda_.1} parent=39 // pred_check
          %p400 = pneg %p109
        $region42: #{_lambda_.1} parent=39 // pred_check_branch
          %402 = sbr.rel (%p400) target = $region44
        $region43: #{_lambda_.1} parent=39 // pred_region
          %s403 = sand.u32 %s94, 1
          %s404 = scalar_lea.sflag [#allocation3], %s403
          %s405 = sand.u32 %s94, 1
          %s406 = smul.addr %s405, 8
          %s407 = scalar_lea.vmem [#allocation2], %s406
          %408 = dma.done %s404, 128
        $region44: #{_lambda_.1} parent=39 // pred_fallthru
          _
      $region40: #{_lambda_.1} parent=5 // pred_fallthru
        _
    $region6: #{_lambda_.1} parent=1 // loop_footer
      %s16 = sadd.s32 1, %s12
    $region7: #{_lambda_.1} parent=1 // loop_footer_branch
      %11 = sbr.rel target = $region3
    $region8: #{_lambda_.1} parent=1 // loop_exit
      _
    %409 = vsyncpa [#allocation3], 1
    %s410 = scalar_lea.sflag [#allocation3], 1
    %411 = vsyncpa %s410, 1

</llo_original>
